<compile_context>
chip_gen: v7x
topology: tpu7x:2x2x1
jax: 0.10.0
libtpu: 0.0.40
codegen_flags: <defaults>
</compile_context>

<pallas_src>
import jax
import jax.numpy as jnp
from jax.experimental import pallas as pl
from jax.experimental.pallas import tpu as pltpu


def _round_up(x, m):
    return (x + m - 1) // m * m


def stacked_gru_kernel(x_hbm_ref, h0_ref, wih_ref, whh_ref, bi_ref, bhn_ref,
                       hn_ref, x_scratch, x_sem):
    """One grid step == one GRU layer.

    r  = sigmoid(x W_ir + b_ir + h W_hr + b_hr)
    z  = sigmoid(x W_iz + b_iz + h W_hz + b_hz)
    n  = tanh   (x W_in + b_in + r * (h W_hn + b_hn))
    h' = n + z * (h - n)          # == (1 - z) * n + z * h

    The r/z/input-side biases are pre-folded into bi_ref on the host, so the
    fused input-side dot already carries them; only b_hn stays separate
    because of the r * (...) term.
    """
    Hp = bhn_ref.shape[-1]  # padded hidden size (static, multiple of 128)

    # Layer 0: DMA the external input once into the VMEM carry scratch.
    # x lives in HBM (memory_space=pl.ANY), so no idle double-buffered
    # BlockSpec window is kept alive for layers >= 1.
    @pl.when(pl.program_id(0) == 0)
    def _():
        cp = pltpu.make_async_copy(x_hbm_ref, x_scratch, x_sem)
        cp.start()
        cp.wait()

    x = x_scratch[...]          # (Bp, Dp) float32 (layer>=1: carried h)
    h = h0_ref[0]               # (Bp, Hp) float32

    # One fused MXU dot per weight matrix -> (Bp, 3*Hp) gate pre-activations.
    # Weights are stored bf16; cast activations to bf16, accumulate in f32.
    gi = jnp.dot(x.astype(jnp.bfloat16), wih_ref[0],
                 preferred_element_type=jnp.float32) + bi_ref[0]
    gh = jnp.dot(h.astype(jnp.bfloat16), whh_ref[0],
                 preferred_element_type=jnp.float32)

    gi_r, gi_z, gi_n = gi[:, :Hp], gi[:, Hp:2 * Hp], gi[:, 2 * Hp:]
    gh_r, gh_z, gh_n = gh[:, :Hp], gh[:, Hp:2 * Hp], gh[:, 2 * Hp:]

    r = jax.nn.sigmoid(gi_r + gh_r)
    z = jax.nn.sigmoid(gi_z + gh_z)
    n = jnp.tanh(gi_n + r * (gh_n + bhn_ref[0]))
    h_new = n + z * (h - n)

    hn_ref[0] = h_new
    # Carry to the next layer's input.  Rows [Hp:Dp] of every W_ih for layers
    # >= 1 are zero, so stale layer-0 input left in x_scratch[:, Hp:] is
    # harmless and does not need clearing.
    x_scratch[:, :Hp] = h_new


def _vmem_limit_bytes(Bp, Dp, Hp, G):
    """Explicit scoped-VMEM budget: double-buffered bf16 fused weights +
    f32 activation windows + carry scratch, with 2x headroom, clamped so it
    stays under every listed generation's physical VMEM."""
    weights = 2 * (Dp * G + Hp * G) * 2      # double-buffered bf16 W_ih / W_hh
    acts = 2 * 2 * Bp * Hp * 4               # h0-in + hn-out windows (f32)
    biases = 2 * 8 * (G + Hp) * 4            # sublane-padded bias windows
    scratch = Bp * Dp * 4                    # layer-to-layer carry scratch
    budget = weights + acts + biases + scratch
    return int(min(max(2 * budget, 32 << 20), 100 << 20))


def stacked_gru_forward(x_pad, h0_pad, wih, whh, bi, bhn):
    """x_pad: (Bp, Dp) f32; h0_pad: (L, Bp, Hp) f32; wih/whh: bf16 stacked &
    padded per layer; bi/bhn: f32 fused biases."""
    L, Bp, Hp = h0_pad.shape
    Dp = x_pad.shape[1]
    G = wih.shape[2]
    return pl.pallas_call(
        stacked_gru_kernel,
        out_shape=jax.ShapeDtypeStruct((L, Bp, Hp), jnp.float32),
        grid_spec=pltpu.PrefetchScalarGridSpec(
            num_scalar_prefetch=0,
            grid=(L,),
            in_specs=[
                pl.BlockSpec(memory_space=pl.ANY),               # layer-0 input (HBM)
                pl.BlockSpec((1, Bp, Hp), lambda l: (l, 0, 0)),  # h0 per layer
                pl.BlockSpec((1, Dp, G), lambda l: (l, 0, 0)),   # fused W_ih (bf16)
                pl.BlockSpec((1, Hp, G), lambda l: (l, 0, 0)),   # fused W_hh (bf16)
                pl.BlockSpec((1, 1, G), lambda l: (l, 0, 0)),    # fused bias (r,z,n_in)
                pl.BlockSpec((1, 1, Hp), lambda l: (l, 0, 0)),   # b_hn
            ],
            out_specs=pl.BlockSpec((1, Bp, Hp), lambda l: (l, 0, 0)),
            scratch_shapes=[
                pltpu.VMEM((Bp, Dp), jnp.float32),   # layer-to-layer carry
                pltpu.SemaphoreType.DMA(()),         # one-shot x DMA
            ],
        ),
        compiler_params=pltpu.CompilerParams(
            dimension_semantics=("arbitrary",),
            vmem_limit_bytes=_vmem_limit_bytes(Bp, Dp, Hp, G)),
    )(x_pad, h0_pad, wih, whh, bi, bhn)


class StackingGRUCellPallas:
    """JAX/Pallas equivalent of the PyTorch StackingGRUCell (inference)."""

    def __init__(self, input_size, hidden_size, num_layers, dropout, key):
        self.input_size = input_size
        self.hidden_size = hidden_size
        self.num_layers = num_layers
        self.dropout = dropout  # identity at inference

        H = hidden_size
        Hp = _round_up(H, 128)                       # lane-dense hidden
        Dp = max(_round_up(input_size, 128), Hp)     # shared padded input width
        G = 3 * Hp                                   # fused gate width
        self.Hp, self.Dp, self.G = Hp, Dp, G

        k = 1.0 / jnp.sqrt(hidden_size)
        self.raw_params = []                          # f32 params for reference
        wih_s = jnp.zeros((num_layers, Dp, G), jnp.float32)
        whh_s = jnp.zeros((num_layers, Hp, G), jnp.float32)
        bi_s = jnp.zeros((num_layers, 1, G), jnp.float32)
        bhn_s = jnp.zeros((num_layers, 1, Hp), jnp.float32)

        for i in range(num_layers):
            in_dim = input_size if i == 0 else hidden_size
            key, k1, k2, k3, k4 = jax.random.split(key, 5)
            # gate order r, z, n (PyTorch GRUCell ordering); stored transposed
            # relative to torch, i.e. (in_dim, H) so x @ W works directly.
            w_ih = jax.random.uniform(k1, (3, in_dim, H), jnp.float32, -k, k)
            w_hh = jax.random.uniform(k2, (3, H, H), jnp.float32, -k, k)
            b_ih = jax.random.uniform(k3, (3, H), jnp.float32, -k, k)
            b_hh = jax.random.uniform(k4, (3, H), jnp.float32, -k, k)
            self.raw_params.append((w_ih, w_hh, b_ih, b_hh))

            for g in range(3):
                wih_s = wih_s.at[i, :in_dim, g * Hp:g * Hp + H].set(w_ih[g])
                whh_s = whh_s.at[i, :H, g * Hp:g * Hp + H].set(w_hh[g])
            # fused input-side bias: r/z slots fold in the hidden-side bias
            bi_s = bi_s.at[i, 0, 0 * Hp:0 * Hp + H].set(b_ih[0] + b_hh[0])
            bi_s = bi_s.at[i, 0, 1 * Hp:1 * Hp + H].set(b_ih[1] + b_hh[1])
            bi_s = bi_s.at[i, 0, 2 * Hp:2 * Hp + H].set(b_ih[2])
            bhn_s = bhn_s.at[i, 0, :H].set(b_hh[2])

        # TODO(synk): for sub-bf16 weight quantization use int8 on v5e/v6e but
        #             fp8 on v7x (its MXU dropped integer support).
        self.wih = wih_s.astype(jnp.bfloat16)   # weight-DMA-bound regime: bf16
        self.whh = whh_s.astype(jnp.bfloat16)
        self.bi = bi_s                           # biases stay f32
        self.bhn = bhn_s

    def __call__(self, inp, h0):
        """
        inp: (batch, input_size)
        h0 : (num_layers, batch, hidden_size)
        returns (output (batch, hidden), hn (num_layers, batch, hidden))
        """
        B = inp.shape[0]
        H, Hp, Dp, L = self.hidden_size, self.Hp, self.Dp, self.num_layers
        Bp = _round_up(B, 8)

        # one-time layout plumbing: pad to lane/sublane-dense shapes
        x_pad = jnp.zeros((Bp, Dp), jnp.float32).at[:B, :inp.shape[1]].set(inp)
        h0_pad = jnp.zeros((L, Bp, Hp), jnp.float32).at[:, :B, :H].set(h0)

        hn_pad = stacked_gru_forward(x_pad, h0_pad, self.wih, self.whh,
                                     self.bi, self.bhn)
        hn = hn_pad[:, :B, :H]
        # nn.Dropout in eval mode == identity, so output is just the last h.
        return hn[-1], hn


def _reference_forward(model, inp, h0):
    """Pure-jnp f32 reference of the same math (torch GRUCell semantics)."""
    hn = []
    output = inp
    for i in range(model.num_layers):
        w_ih, w_hh, b_ih, b_hh = model.raw_params[i]
        h = h0[i]
        gi = [output @ w_ih[g] + b_ih[g] for g in range(3)]
        gh = [h @ w_hh[g] + b_hh[g] for g in range(3)]
        r = jax.nn.sigmoid(gi[0] + gh[0])
        z = jax.nn.sigmoid(gi[1] + gh[1])
        n = jnp.tanh(gi[2] + r * gh[2])
        h_new = (1.0 - z) * n + z * h
        hn.append(h_new)
        output = h_new
    return output, jnp.stack(hn)


if __name__ == "__main__":
    batch = 8
    input_size = 16
    hidden_size = 32
    num_layers = 3
    dropout = 0.1  # identity at inference

    key = jax.random.PRNGKey(0)
    key, kx, kh, kp = jax.random.split(key, 4)

    x = jax.random.normal(kx, (batch, input_size), jnp.float32)
    h0 = jax.random.normal(kh, (num_layers, batch, hidden_size), jnp.float32)

    model = StackingGRUCellPallas(input_size, hidden_size, num_layers,
                                  dropout, kp)

    output, hn = model(x, h0)
    output = jax.block_until_ready(output)
    hn = jax.block_until_ready(hn)

    # sanity check against pure-jnp f32 reference; kernel uses bf16 weights
    # (and bf16-cast activations at the MXU dots), so tolerance is relaxed
    # from 1e-5 to a few e-2 per the perf-review guidance.
    ref_out, ref_hn = _reference_forward(model, x, h0)
    assert output.shape == (batch, hidden_size)
    assert hn.shape == (num_layers, batch, hidden_size)
    assert jnp.allclose(output, ref_out, atol=5e-2, rtol=5e-2), "output mismatch"
    assert jnp.allclose(hn, ref_hn, atol=5e-2, rtol=5e-2), "hn mismatch"

    print("KERNEL_OK")
</pallas_src>

<mosaic_0001>
module attributes {stable_mosaic.version = 11 : i64} {
  func.func @stacked_gru_kernel(%arg0: i32, %arg1: memref<8x128xf32, #tpu.memory_space<any>>, %arg2: memref<1x8x128xf32, #tpu.memory_space<vmem>>, %arg3: memref<1x128x384xbf16, #tpu.memory_space<vmem>>, %arg4: memref<1x128x384xbf16, #tpu.memory_space<vmem>>, %arg5: memref<1x1x384xf32, #tpu.memory_space<vmem>>, %arg6: memref<1x1x128xf32, #tpu.memory_space<vmem>>, %arg7: memref<1x8x128xf32, #tpu.memory_space<vmem>>, %arg8: memref<8x128xf32, #tpu.memory_space<vmem>>, %arg9: memref<!tpu.dma_semaphore, #tpu.memory_space<semaphore_mem>>) attributes {dimension_semantics = [#tpu.dimension_semantics<arbitrary>], iteration_bounds = array<i64: 3>, scalar_prefetch = 0 : i64, scratch_operands = 2 : i64, tpu.core_type = #tpu.core_type<tc>, window_params = [{}, {transform_indices = @transform_1, window_bounds = array<i64: 1, 8, 128>}, {transform_indices = @transform_2, window_bounds = array<i64: 1, 128, 384>}, {transform_indices = @transform_3, window_bounds = array<i64: 1, 128, 384>}, {transform_indices = @transform_4, window_bounds = array<i64: 1, 1, 384>}, {transform_indices = @transform_5, window_bounds = array<i64: 1, 1, 128>}, {transform_indices = @transform_6, window_bounds = array<i64: 1, 8, 128>}]} {
    %c0_i32 = arith.constant 0 : i32
    %0 = arith.cmpi eq, %arg0, %c0_i32 : i32
    %1 = arith.extui %0 : i1 to i32
    %c0_i32_0 = arith.constant 0 : i32
    %2 = arith.cmpi ne, %1, %c0_i32_0 : i32
    scf.if %2 {
      tpu.enqueue_dma source(%arg1 : memref<8x128xf32, #tpu.memory_space<any>>) target(%arg8 : memref<8x128xf32, #tpu.memory_space<vmem>>) target_semaphore(%arg9 : memref<!tpu.dma_semaphore, #tpu.memory_space<semaphore_mem>>)
      tpu.wait_dma2 semaphore(%arg9 : memref<!tpu.dma_semaphore, #tpu.memory_space<semaphore_mem>>) src(%arg1 : memref<8x128xf32, #tpu.memory_space<any>>) dst(%arg8 : memref<8x128xf32, #tpu.memory_space<vmem>>)
    } else {
    }
    %c0 = arith.constant 0 : index
    %c0_1 = arith.constant 0 : index
    %3 = vector.load %arg8[%c0, %c0_1] : memref<8x128xf32, #tpu.memory_space<vmem>>, vector<8x128xf32>
    %c0_2 = arith.constant 0 : index
    %c0_3 = arith.constant 0 : index
    %c0_4 = arith.constant 0 : index
    %4 = vector.load %arg2[%c0_2, %c0_3, %c0_4] : memref<1x8x128xf32, #tpu.memory_space<vmem>>, vector<1x8x128xf32>
    %5 = vector.shape_cast %4 : vector<1x8x128xf32> to vector<8x128xf32>
    %6 = arith.truncf %3 : vector<8x128xf32> to vector<8x128xbf16>
    %c0_5 = arith.constant 0 : index
    %c0_6 = arith.constant 0 : index
    %c0_7 = arith.constant 0 : index
    %7 = vector.load %arg3[%c0_5, %c0_6, %c0_7] : memref<1x128x384xbf16, #tpu.memory_space<vmem>>, vector<1x128x384xbf16>
    %8 = vector.shape_cast %7 : vector<1x128x384xbf16> to vector<128x384xbf16>
    %cst = arith.constant dense<0.000000e+00> : vector<8x384xf32>
    %9 = tpu.matmul %6, %8, %cst {dimension_numbers = #tpu.dot_dimension_numbers<[1], [0], [0], [1], [0, 0, 1, 1], [], []>} : vector<8x128xbf16>, vector<128x384xbf16>, vector<8x384xf32> -> vector<8x384xf32>
    %c0_8 = arith.constant 0 : index
    %c0_9 = arith.constant 0 : index
    %c0_10 = arith.constant 0 : index
    %10 = vector.load %arg5[%c0_8, %c0_9, %c0_10] : memref<1x1x384xf32, #tpu.memory_space<vmem>>, vector<1x1x384xf32>
    %11 = vector.shape_cast %10 : vector<1x1x384xf32> to vector<1x384xf32>
    %12 = vector.broadcast %11 : vector<1x384xf32> to vector<8x384xf32>
    %13 = arith.addf %9, %12 : vector<8x384xf32>
    %14 = arith.truncf %5 : vector<8x128xf32> to vector<8x128xbf16>
    %c0_11 = arith.constant 0 : index
    %c0_12 = arith.constant 0 : index
    %c0_13 = arith.constant 0 : index
    %15 = vector.load %arg4[%c0_11, %c0_12, %c0_13] : memref<1x128x384xbf16, #tpu.memory_space<vmem>>, vector<1x128x384xbf16>
    %16 = vector.shape_cast %15 : vector<1x128x384xbf16> to vector<128x384xbf16>
    %cst_14 = arith.constant dense<0.000000e+00> : vector<8x384xf32>
    %17 = tpu.matmul %14, %16, %cst_14 {dimension_numbers = #tpu.dot_dimension_numbers<[1], [0], [0], [1], [0, 0, 1, 1], [], []>} : vector<8x128xbf16>, vector<128x384xbf16>, vector<8x384xf32> -> vector<8x384xf32>
    %18 = vector.extract_strided_slice %13 {offsets = [0, 0], sizes = [8, 128], strides = [1, 1]} : vector<8x384xf32> to vector<8x128xf32>
    %19 = vector.extract_strided_slice %13 {offsets = [0, 128], sizes = [8, 128], strides = [1, 1]} : vector<8x384xf32> to vector<8x128xf32>
    %20 = vector.extract_strided_slice %13 {offsets = [0, 256], sizes = [8, 128], strides = [1, 1]} : vector<8x384xf32> to vector<8x128xf32>
    %21 = vector.extract_strided_slice %17 {offsets = [0, 0], sizes = [8, 128], strides = [1, 1]} : vector<8x384xf32> to vector<8x128xf32>
    %22 = vector.extract_strided_slice %17 {offsets = [0, 128], sizes = [8, 128], strides = [1, 1]} : vector<8x384xf32> to vector<8x128xf32>
    %23 = vector.extract_strided_slice %17 {offsets = [0, 256], sizes = [8, 128], strides = [1, 1]} : vector<8x384xf32> to vector<8x128xf32>
    %24 = arith.addf %18, %21 : vector<8x128xf32>
    %25 = arith.negf %24 : vector<8x128xf32>
    %26 = math.exp %25 : vector<8x128xf32>
    %cst_15 = arith.constant 1.000000e+00 : f32
    %27 = vector.broadcast %cst_15 : f32 to vector<8x128xf32>
    %28 = arith.addf %27, %26 : vector<8x128xf32>
    %29 = arith.divf %27, %28 : vector<8x128xf32>
    %30 = arith.addf %19, %22 : vector<8x128xf32>
    %31 = arith.negf %30 : vector<8x128xf32>
    %32 = math.exp %31 : vector<8x128xf32>
    %cst_16 = arith.constant 1.000000e+00 : f32
    %33 = vector.broadcast %cst_16 : f32 to vector<8x128xf32>
    %34 = arith.addf %33, %32 : vector<8x128xf32>
    %35 = arith.divf %33, %34 : vector<8x128xf32>
    %c0_17 = arith.constant 0 : index
    %c0_18 = arith.constant 0 : index
    %c0_19 = arith.constant 0 : index
    %36 = vector.load %arg6[%c0_17, %c0_18, %c0_19] : memref<1x1x128xf32, #tpu.memory_space<vmem>>, vector<1x1x128xf32>
    %37 = vector.shape_cast %36 : vector<1x1x128xf32> to vector<1x128xf32>
    %38 = vector.broadcast %37 : vector<1x128xf32> to vector<8x128xf32>
    %39 = arith.addf %23, %38 : vector<8x128xf32>
    %40 = arith.mulf %29, %39 : vector<8x128xf32>
    %41 = arith.addf %20, %40 : vector<8x128xf32>
    %42 = math.tanh %41 : vector<8x128xf32>
    %43 = arith.subf %5, %42 : vector<8x128xf32>
    %44 = arith.mulf %35, %43 : vector<8x128xf32>
    %45 = arith.addf %42, %44 : vector<8x128xf32>
    %c0_20 = arith.constant 0 : index
    %c0_21 = arith.constant 0 : index
    %c0_22 = arith.constant 0 : index
    %46 = vector.load %arg7[%c0_20, %c0_21, %c0_22] : memref<1x8x128xf32, #tpu.memory_space<vmem>>, vector<1x8x128xf32>
    %47 = vector.shape_cast %46 : vector<1x8x128xf32> to vector<8x128xf32>
    %48 = vector.shape_cast %45 : vector<8x128xf32> to vector<1x8x128xf32>
    tpu.vector_store %arg7[%c0_20, %c0_21, %c0_22], %48 {strides = array<i32>} : memref<1x8x128xf32, #tpu.memory_space<vmem>>, vector<1x8x128xf32>,
    %c0_23 = arith.constant 0 : index
    %c0_24 = arith.constant 0 : index
    %49 = vector.load %arg8[%c0_23, %c0_24] : memref<8x128xf32, #tpu.memory_space<vmem>>, vector<8x128xf32>
    tpu.vector_store %arg8[%c0_23, %c0_24], %45 {strides = array<i32>} : memref<8x128xf32, #tpu.memory_space<vmem>>, vector<8x128xf32>,
    return
  }
  func.func @transform_1(%arg0: i32) -> (i32, i32, i32) {
    %c0_i32 = arith.constant 0 : i32
    %c0_i32_0 = arith.constant 0 : i32
    %c0_i32_1 = arith.constant 0 : i32
    return %arg0, %c0_i32, %c0_i32_0 : i32, i32, i32
  }
  func.func @transform_2(%arg0: i32) -> (i32, i32, i32) {
    %c0_i32 = arith.constant 0 : i32
    %c0_i32_0 = arith.constant 0 : i32
    %c0_i32_1 = arith.constant 0 : i32
    return %arg0, %c0_i32, %c0_i32_0 : i32, i32, i32
  }
  func.func @transform_3(%arg0: i32) -> (i32, i32, i32) {
    %c0_i32 = arith.constant 0 : i32
    %c0_i32_0 = arith.constant 0 : i32
    %c0_i32_1 = arith.constant 0 : i32
    return %arg0, %c0_i32, %c0_i32_0 : i32, i32, i32
  }
  func.func @transform_4(%arg0: i32) -> (i32, i32, i32) {
    %c0_i32 = arith.constant 0 : i32
    %c0_i32_0 = arith.constant 0 : i32
    %c0_i32_1 = arith.constant 0 : i32
    return %arg0, %c0_i32, %c0_i32_0 : i32, i32, i32
  }
  func.func @transform_5(%arg0: i32) -> (i32, i32, i32) {
    %c0_i32 = arith.constant 0 : i32
    %c0_i32_0 = arith.constant 0 : i32
    %c0_i32_1 = arith.constant 0 : i32
    return %arg0, %c0_i32, %c0_i32_0 : i32, i32, i32
  }
  func.func @transform_6(%arg0: i32) -> (i32, i32, i32) {
    %c0_i32 = arith.constant 0 : i32
    %c0_i32_0 = arith.constant 0 : i32
    %c0_i32_1 = arith.constant 0 : i32
    return %arg0, %c0_i32, %c0_i32_0 : i32, i32, i32
  }
}

</mosaic_0001>

<llo_original>
// kernel: tpu_custom_call.1
$region0: #{tpu_custom_call.1}
  #allocation0 [shape = 'u32[]', space=smem, size = 0x4, offset = 0x4, fixed_abs, tag = 'smem constant byte address 0x4 - core index']
  #allocation1 [shape = 'u32[144,128]{1,0:T(1,128)}', space=vmem, size = 0x12000, scoped, tag = 'internal scratch']
  #allocation2 [shape = 'f32[8,128]{1,0:T(8,128)}', space=vmem, size = 0x1000, scoped, tag = 'scratch operand']
  #allocation3 [shape = 's32[1]{0}', space=sflag, size = 0x4, scoped, tag = 'scratch operand']
  #allocation11 [shape = 's32[]', space=sflag, size = 0x4, offset = 0, fixed_abs, tag = 'sflag constant byte address 0x0 - dummy sync flag']
  #allocation12 [shape = 's32[]', space=sflag, size = 0x4, offset = 0, fixed_abs, tag = 'sflag constant byte address 0x0 - dummy sync flag']
  #allocation13 [shape = 'u32[]', space=smem, size = 0x4, offset = 0x44, fixed_abs, tag = 'smem constant byte address 0x44 - assertion arg 0']
  #allocation14 [shape = 'u32[]', space=smem, size = 0x4, offset = 0x48, fixed_abs, tag = 'smem constant byte address 0x48 - assertion arg 1']
  %s0 = inlined_call_operand.hbm [shape: f32[8,128], index: 0, kind: input, shape index: {}]
  %s1 = inlined_call_operand.hbm [shape: f32[3,8,128], index: 1, kind: input, shape index: {}]
  %s2 = inlined_call_operand.hbm [shape: bf16[3,128,384], index: 2, kind: input, shape index: {}]
  %s3 = inlined_call_operand.hbm [shape: bf16[3,128,384], index: 3, kind: input, shape index: {}]
  %s4 = inlined_call_operand.vmem [shape: f32[3,1,384], index: 4, kind: input, shape index: {}]
  %s5 = inlined_call_operand.vmem [shape: f32[3,1,128], index: 5, kind: input, shape index: {}]
  %s6 = inlined_call_operand.hbm [shape: f32[3,8,128], index: 6, kind: output, shape index: {}]
  %s7 = sld [smem:[#allocation0]]
  $region73: #{tpu_custom_call.1} parent=0
    _
  %s9 = ssub.s32 1, %s7
  %s10 = scalar_select 0, %s9, %s7
  $region1: #{tpu_custom_call.1} parent=0
    #allocation4 [shape = 'u8[8192]{0}', space=vmem, size = 0x2000, scoped, tag = 'input window, operand 1']
    #allocation5 [shape = 's32[2]{0}', space=sflag, size = 0x8, scoped, tag = 'scoped memory for tpu_custom_call.1']
    #allocation6 [shape = 's32[2]{0}', space=sflag, size = 0x8, scoped, tag = 'scoped memory for tpu_custom_call.1']
    #allocation7 [shape = 'u8[196608]{0}', space=vmem, size = 0x30000, scoped, tag = 'input window, operand 2']
    #allocation8 [shape = 's32[2]{0}', space=sflag, size = 0x8, scoped, tag = 'scoped memory for tpu_custom_call.1']
    #allocation9 [shape = 'u8[196608]{0}', space=vmem, size = 0x30000, scoped, tag = 'input window, operand 3']
    #allocation10 [shape = 'u8[8192]{0}', space=vmem, size = 0x2000, scoped, tag = 'output window, operand 0']
    %11 = vsyncpa [#allocation5], 0
    %s12 = scalar_lea.sflag [#allocation5], 1
    %13 = vsyncpa %s12, 0
    %14 = vsyncpa [#allocation8], 0
    %s15 = scalar_lea.sflag [#allocation8], 1
    %16 = vsyncpa %s15, 0
    %17 = vsyncpa [#allocation6], 0
    %s18 = scalar_lea.sflag [#allocation6], 1
    %19 = vsyncpa %s18, 0
    loop: start=0, step=1, limit=5
    $region2: #{tpu_custom_call.1} parent=1 // loop_pre_header
      _
    $region3: #{tpu_custom_call.1} parent=1 // loop_header
      %s21 = sphi 0, %s25
      %p22 = scmp.ge.s32.totalorder %s21, 5
      %s31 = sphi 0, %s33
      %s34 = sphi 0, %s31
      %s35 = sphi 0, %s34
      %s51 = sphi 0, %s35
      %s57 = sphi 0, %s59
      %s60 = sphi 0, %s57
      %s61 = sphi 0, %s60
      %s77 = sphi 0, %s61
      %s83 = sphi 0, %s85
      %s86 = sphi 0, %s83
      %s87 = sphi 0, %s86
      %s103 = sphi 0, %s87
      %s109 = sphi 0, %s111
      %s112 = sphi 0, %s109
      %s113 = sphi 0, %s112
      %s129 = sphi 0, %s113
      %s135 = sphi 0, %s137
      %s138 = sphi 0, %s135
      %s139 = sphi 0, %s138
      %s155 = sphi 0, %s139
      %s161 = sphi 0, %s163
      %s164 = sphi 0, %s161
      %s165 = sphi 0, %s164
      %s181 = sphi 0, %s165
    $region4: #{tpu_custom_call.1} parent=1 // loop_header_branch
      %24 = sbr.rel (%p22) target = $region8
    $region5: #{tpu_custom_call.1} parent=1 // loop_body
      %s26 = ssub.s32 %s21, 1
      %s27 = ssub.s32 %s21, 2
      %s28 = sadd.s32 %s21, 1
      %s29 = ssub.s32 %s21, %s28
      %p30 = scmp.eq.s32.totalorder %s29, 0
      %s32 = sadd.s32 %s31, 1
      %s33 = scalar_select %p30, %s31, %s32
      %p36 = pneg %p30
      %p37 = scmp.eq.s32.totalorder %s21, 2
      %p38 = por %p36, %p37
      %p39 = scmp.ne.s32.totalorder %s31, %s34
      %p40 = scmp.eq.s32.totalorder %s21, 0
      %p41 = por %p39, %p40
      %p42 = scmp.ne.s32.totalorder %s31, %s34
      %p43 = scmp.eq.s32.totalorder %s26, 2
      %p44 = por %p42, %p43
      %p45 = scmp.ne.s32.totalorder %s34, %s35
      %p46 = scmp.eq.s32.totalorder %s26, 0
      %p47 = por %p45, %p46
      %p48 = scmp.ne.s32.totalorder %s34, %s35
      %p49 = scmp.eq.s32.totalorder %s27, 2
      %p50 = por %p48, %p49
      %p52 = scmp.ne.s32.totalorder %s35, %s51
      %p53 = scmp.eq.s32.totalorder %s27, 0
      %p54 = por %p52, %p53
      %s55 = ssub.s32 %s21, %s28
      %p56 = scmp.eq.s32.totalorder %s55, 0
      %s58 = sadd.s32 %s57, 1
      %s59 = scalar_select %p56, %s57, %s58
      %p62 = pneg %p56
      %p63 = scmp.eq.s32.totalorder %s21, 2
      %p64 = por %p62, %p63
      %p65 = scmp.ne.s32.totalorder %s57, %s60
      %p66 = scmp.eq.s32.totalorder %s21, 0
      %p67 = por %p65, %p66
      %p68 = scmp.ne.s32.totalorder %s57, %s60
      %p69 = scmp.eq.s32.totalorder %s26, 2
      %p70 = por %p68, %p69
      %p71 = scmp.ne.s32.totalorder %s60, %s61
      %p72 = scmp.eq.s32.totalorder %s26, 0
      %p73 = por %p71, %p72
      %p74 = scmp.ne.s32.totalorder %s60, %s61
      %p75 = scmp.eq.s32.totalorder %s27, 2
      %p76 = por %p74, %p75
      %p78 = scmp.ne.s32.totalorder %s61, %s77
      %p79 = scmp.eq.s32.totalorder %s27, 0
      %p80 = por %p78, %p79
      %s81 = ssub.s32 %s21, %s28
      %p82 = scmp.eq.s32.totalorder %s81, 0
      %s84 = sadd.s32 %s83, 1
      %s85 = scalar_select %p82, %s83, %s84
      %p88 = pneg %p82
      %p89 = scmp.eq.s32.totalorder %s21, 2
      %p90 = por %p88, %p89
      %p91 = scmp.ne.s32.totalorder %s83, %s86
      %p92 = scmp.eq.s32.totalorder %s21, 0
      %p93 = por %p91, %p92
      %p94 = scmp.ne.s32.totalorder %s83, %s86
      %p95 = scmp.eq.s32.totalorder %s26, 2
      %p96 = por %p94, %p95
      %p97 = scmp.ne.s32.totalorder %s86, %s87
      %p98 = scmp.eq.s32.totalorder %s26, 0
      %p99 = por %p97, %p98
      %p100 = scmp.ne.s32.totalorder %s86, %s87
      %p101 = scmp.eq.s32.totalorder %s27, 2
      %p102 = por %p100, %p101
      %p104 = scmp.ne.s32.totalorder %s87, %s103
      %p105 = scmp.eq.s32.totalorder %s27, 0
      %p106 = por %p104, %p105
      %s107 = ssub.s32 %s21, %s28
      %p108 = scmp.eq.s32.totalorder %s107, 0
      %s110 = sadd.s32 %s109, 1
      %s111 = scalar_select %p108, %s109, %s110
      %p114 = pneg %p108
      %p115 = scmp.eq.s32.totalorder %s21, 2
      %p116 = por %p114, %p115
      %p117 = scmp.ne.s32.totalorder %s109, %s112
      %p118 = scmp.eq.s32.totalorder %s21, 0
      %p119 = por %p117, %p118
      %p120 = scmp.ne.s32.totalorder %s109, %s112
      %p121 = scmp.eq.s32.totalorder %s26, 2
      %p122 = por %p120, %p121
      %p123 = scmp.ne.s32.totalorder %s112, %s113
      %p124 = scmp.eq.s32.totalorder %s26, 0
      %p125 = por %p123, %p124
      %p126 = scmp.ne.s32.totalorder %s112, %s113
      %p127 = scmp.eq.s32.totalorder %s27, 2
      %p128 = por %p126, %p127
      %p130 = scmp.ne.s32.totalorder %s113, %s129
      %p131 = scmp.eq.s32.totalorder %s27, 0
      %p132 = por %p130, %p131
      %s133 = ssub.s32 %s21, %s28
      %p134 = scmp.eq.s32.totalorder %s133, 0
      %s136 = sadd.s32 %s135, 1
      %s137 = scalar_select %p134, %s135, %s136
      %p140 = pneg %p134
      %p141 = scmp.eq.s32.totalorder %s21, 2
      %p142 = por %p140, %p141
      %p143 = scmp.ne.s32.totalorder %s135, %s138
      %p144 = scmp.eq.s32.totalorder %s21, 0
      %p145 = por %p143, %p144
      %p146 = scmp.ne.s32.totalorder %s135, %s138
      %p147 = scmp.eq.s32.totalorder %s26, 2
      %p148 = por %p146, %p147
      %p149 = scmp.ne.s32.totalorder %s138, %s139
      %p150 = scmp.eq.s32.totalorder %s26, 0
      %p151 = por %p149, %p150
      %p152 = scmp.ne.s32.totalorder %s138, %s139
      %p153 = scmp.eq.s32.totalorder %s27, 2
      %p154 = por %p152, %p153
      %p156 = scmp.ne.s32.totalorder %s139, %s155
      %p157 = scmp.eq.s32.totalorder %s27, 0
      %p158 = por %p156, %p157
      %s159 = ssub.s32 %s21, %s28
      %p160 = scmp.eq.s32.totalorder %s159, 0
      %s162 = sadd.s32 %s161, 1
      %s163 = scalar_select %p160, %s161, %s162
      %p166 = pneg %p160
      %p167 = scmp.eq.s32.totalorder %s21, 2
      %p168 = por %p166, %p167
      %p169 = scmp.ne.s32.totalorder %s161, %s164
      %p170 = scmp.eq.s32.totalorder %s21, 0
      %p171 = por %p169, %p170
      %p172 = scmp.ne.s32.totalorder %s161, %s164
      %p173 = scmp.eq.s32.totalorder %s26, 2
      %p174 = por %p172, %p173
      %p175 = scmp.ne.s32.totalorder %s164, %s165
      %p176 = scmp.eq.s32.totalorder %s26, 0
      %p177 = por %p175, %p176
      %p178 = scmp.ne.s32.totalorder %s164, %s165
      %p179 = scmp.eq.s32.totalorder %s27, 2
      %p180 = por %p178, %p179
      %p182 = scmp.ne.s32.totalorder %s165, %s181
      %p183 = scmp.eq.s32.totalorder %s27, 0
      %p184 = por %p182, %p183
      %p185 = scmp.le.s32.totalorder 1, %s21
      %p186 = scmp.lt.s32.totalorder %s21, 4
      %p187 = pnand %p185, %p186
      %p188 = pneg %p187
      // Predicated region
      $region9: #{tpu_custom_call.1} parent=5 // pred_check
        _
      $region10: #{tpu_custom_call.1} parent=5 // pred_check_branch
        %190 = sbr.rel (%p187) target = $region12
      $region11: #{tpu_custom_call.1} parent=5 // pred_region
        %s191 = ssub.s32 %s21, 1
      $region12: #{tpu_custom_call.1} parent=5 // pred_fallthru
        _
      %p192 = scmp.lt.s32.totalorder %s21, 3
      // Predicated region
      $region13: #{tpu_custom_call.1} parent=5 // pred_check
        %p193 = pneg %p192
      $region14: #{tpu_custom_call.1} parent=5 // pred_check_branch
        %195 = sbr.rel (%p193) target = $region16
      $region15: #{tpu_custom_call.1} parent=5 // pred_region
        // Predicated region
        $region17: #{tpu_custom_call.1} parent=15 // pred_check
          %p196 = pneg %p41
        $region18: #{tpu_custom_call.1} parent=15 // pred_check_branch
          %198 = sbr.rel (%p196) target = $region20
        $region19: #{tpu_custom_call.1} parent=15 // pred_region
          %s199 = sand.u32 %s31, 1
          %s200 = scalar_lea.sflag [#allocation5], %s199
          %s201 = sand.u32 %s31, 1
          %s202 = smul.addr %s201, 8
          %s203 = scalar_lea.vmem [#allocation4], %s202
          %s205 = ssub.s32 128, 128
          %206 = vsyncadd %s200, %s205
          %s207 = smul.addr %s21, 128
          %s208 = scalar_lea.hbm %s1, %s207
          %s210 = sshll.u32 %s203, 4
          %s211 = int_to_ptr.vmem [resolvable:$true] %s210
          %213 = dma.hbm_to_vmem [thread:$0]  %s208, 128, %s211, %s200
        $region20: #{tpu_custom_call.1} parent=15 // pred_fallthru
          _
        // Predicated region
        $region21: #{tpu_custom_call.1} parent=15 // pred_check
          %p214 = pneg %p67
        $region22: #{tpu_custom_call.1} parent=15 // pred_check_branch
          %216 = sbr.rel (%p214) target = $region24
        $region23: #{tpu_custom_call.1} parent=15 // pred_region
          %s217 = sand.u32 %s21, 1
          %s218 = scalar_lea.sflag [#allocation8], %s217
          %s219 = sand.u32 %s57, 1
          %s220 = smul.addr %s219, 192
          %s221 = scalar_lea.vmem [#allocation7], %s220
          %s223 = ssub.s32 3072, 3072
          %224 = vsyncadd %s218, %s223
          %s225 = smul.addr %s21, 48
          %s226 = smul.addr %s225, 64
          %s227 = scalar_lea.hbm %s2, %s226
          %s228 = sshll.u32 %s221, 4
          %s229 = int_to_ptr.vmem [resolvable:$true] %s228
          %234 = dma.hbm_to_vmem [thread:$0]  %s227, 3072, %s229, %s218, 192, 192, 12
        $region24: #{tpu_custom_call.1} parent=15 // pred_fallthru
          _
        // Predicated region
        $region25: #{tpu_custom_call.1} parent=15 // pred_check
          %p235 = pneg %p93
        $region26: #{tpu_custom_call.1} parent=15 // pred_check_branch
          %237 = sbr.rel (%p235) target = $region28
        $region27: #{tpu_custom_call.1} parent=15 // pred_region
          %s238 = sand.u32 %s21, 1
          %s239 = scalar_lea.sflag [#allocation8], %s238
          %s240 = sand.u32 %s83, 1
          %s241 = smul.addr %s240, 192
          %s242 = scalar_lea.vmem [#allocation9], %s241
          %s244 = ssub.s32 3072, 3072
          %245 = vsyncadd %s239, %s244
          %s246 = smul.addr %s21, 48
          %s247 = smul.addr %s246, 64
          %s248 = scalar_lea.hbm %s3, %s247
          %s249 = sshll.u32 %s242, 4
          %s250 = int_to_ptr.vmem [resolvable:$true] %s249
          %255 = dma.hbm_to_vmem [thread:$0]  %s248, 3072, %s250, %s239, 192, 192, 12
        $region28: #{tpu_custom_call.1} parent=15 // pred_fallthru
          _
        // Predicated region
        $region29: #{tpu_custom_call.1} parent=15 // pred_check
          %p256 = pneg %p119
        $region30: #{tpu_custom_call.1} parent=15 // pred_check_branch
          %258 = sbr.rel (%p256) target = $region32
        $region31: #{tpu_custom_call.1} parent=15 // pred_region
          %p259 = scmp.lt.s32.totalorder %s21, 2
          %s260 = scalar_select %p259, %s21, 2
          %s261 = smul.addr %s260, 3
          %s262 = scalar_lea.vmem %s4, %s261
        $region32: #{tpu_custom_call.1} parent=15 // pred_fallthru
          _
        // Predicated region
        $region33: #{tpu_custom_call.1} parent=15 // pred_check
          %p263 = pneg %p145
        $region34: #{tpu_custom_call.1} parent=15 // pred_check_branch
          %265 = sbr.rel (%p263) target = $region36
        $region35: #{tpu_custom_call.1} parent=15 // pred_region
          %p266 = scmp.lt.s32.totalorder %s21, 2
          %s267 = scalar_select %p266, %s21, 2
          %s268 = scalar_lea.vmem %s5, %s267
        $region36: #{tpu_custom_call.1} parent=15 // pred_fallthru
          _
      $region16: #{tpu_custom_call.1} parent=5 // pred_fallthru
        _
      %p269 = scmp.le.s32.totalorder 1, %s21
      %p270 = scmp.lt.s32.totalorder %s21, 4
      %p271 = pnand %p269, %p270
      %p272 = pneg %p271
      // Predicated region
      $region37: #{tpu_custom_call.1} parent=5 // pred_check
        _
      $region38: #{tpu_custom_call.1} parent=5 // pred_check_branch
        %274 = sbr.rel (%p271) target = $region40
      $region39: #{tpu_custom_call.1} parent=5 // pred_region
        %s275 = ssub.s32 %s21, 1
        %s276 = sand.u32 %s34, 1
        %s277 = scalar_lea.sflag [#allocation5], %s276
        %s278 = sand.u32 %s34, 1
        %s279 = smul.addr %s278, 8
        %s280 = scalar_lea.vmem [#allocation4], %s279
        // Predicated region
        $region41: #{tpu_custom_call.1} parent=39 // pred_check
          %p281 = pneg %p47
        $region42: #{tpu_custom_call.1} parent=39 // pred_check_branch
          %283 = sbr.rel (%p281) target = $region44
        $region43: #{tpu_custom_call.1} parent=39 // pred_region
          %284 = dma.done %s277, 128
        $region44: #{tpu_custom_call.1} parent=39 // pred_fallthru
          _
        %s285 = sand.u32 %s26, 1
        %s286 = scalar_lea.sflag [#allocation8], %s285
        %s287 = sand.u32 %s60, 1
        %s288 = smul.addr %s287, 192
        %s289 = scalar_lea.vmem [#allocation7], %s288
        // Predicated region
        $region45: #{tpu_custom_call.1} parent=39 // pred_check
          %p290 = pneg %p73
        $region46: #{tpu_custom_call.1} parent=39 // pred_check_branch
          %292 = sbr.rel (%p290) target = $region48
        $region47: #{tpu_custom_call.1} parent=39 // pred_region
          %293 = dma.done %s286, 3072
        $region48: #{tpu_custom_call.1} parent=39 // pred_fallthru
          _
        %s294 = sand.u32 %s26, 1
        %s295 = scalar_lea.sflag [#allocation8], %s294
        %s296 = sand.u32 %s86, 1
        %s297 = smul.addr %s296, 192
        %s298 = scalar_lea.vmem [#allocation9], %s297
        // Predicated region
        $region49: #{tpu_custom_call.1} parent=39 // pred_check
          %p299 = pneg %p99
        $region50: #{tpu_custom_call.1} parent=39 // pred_check_branch
          %301 = sbr.rel (%p299) target = $region52
        $region51: #{tpu_custom_call.1} parent=39 // pred_region
          %302 = dma.done %s295, 3072
        $region52: #{tpu_custom_call.1} parent=39 // pred_fallthru
          _
        %s303 = sand.u32 %s34, 1
        %s304 = scalar_lea.sflag [#allocation5], %s303
        %s305 = sand.u32 %s34, 1
        %s306 = smul.addr %s305, 8
        %s307 = scalar_lea.vmem [#allocation4], %s306
        %p308 = pneg %p47
        %p309 = pneg %p44
        %s310 = sand.u32 %s26, 1
        %s311 = scalar_lea.sflag [#allocation8], %s310
        %s312 = sand.u32 %s60, 1
        %s313 = smul.addr %s312, 192
        %s314 = scalar_lea.vmem [#allocation7], %s313
        %p315 = pneg %p73
        %p316 = pneg %p70
        %s317 = sand.u32 %s26, 1
        %s318 = scalar_lea.sflag [#allocation8], %s317
        %s319 = sand.u32 %s86, 1
        %s320 = smul.addr %s319, 192
        %s321 = scalar_lea.vmem [#allocation9], %s320
        %p322 = pneg %p99
        %p323 = pneg %p96
        %p324 = scmp.lt.s32.totalorder %s26, 2
        %s325 = scalar_select %p324, %s26, 2
        %s326 = smul.addr %s325, 3
        %s327 = scalar_lea.vmem %s4, %s326
        %p328 = pneg %p125
        %p329 = pneg %p122
        %p330 = scmp.lt.s32.totalorder %s26, 2
        %s331 = scalar_select %p330, %s26, 2
        %s332 = scalar_lea.vmem %s5, %s331
        %p333 = pneg %p151
        %p334 = pneg %p148
        %p335 = pneg %p177
        %p336 = pneg %p174
        %s337 = sand.u32 %s164, 1
        %s338 = scalar_lea.sflag [#allocation6], %s337
        %s339 = sand.u32 %s164, 1
        %s340 = smul.addr %s339, 8
        %s341 = scalar_lea.vmem [#allocation10], %s340
        %p342 = scmp.lt.s32.totalorder %s26, 2
        %s343 = scalar_select %p342, %s26, 2
        %s344 = smul.addr %s343, 3
        %s345 = scalar_lea.vmem %s4, %s344
        %p346 = scmp.lt.s32.totalorder %s26, 2
        %s347 = scalar_select %p346, %s26, 2
        %s348 = scalar_lea.vmem %s5, %s347
        %p350 = scmp.eq.s32.totalorder %s26, 0
        // Predicated region
        $region53: #{tpu_custom_call.1} parent=39 // pred_check
          %p351 = pneg %p350
        $region54: #{tpu_custom_call.1} parent=39 // pred_check_branch
          %353 = sbr.rel (%p351) target = $region56
        $region55: #{tpu_custom_call.1} parent=39 // pred_region
          // Predicated region
          $region57: #{tpu_custom_call.1} parent=55 // pred_check
            _
          $region58: #{tpu_custom_call.1} parent=55 // pred_check_branch
            %355 = sbr.rel target = $region60
          $region59: #{tpu_custom_call.1} parent=55 // pred_region
            %356 = sst [smem:[#allocation13]] [#allocation12]
            %357 = sst [smem:[#allocation14]] [#allocation11]
          $region60: #{tpu_custom_call.1} parent=55 // pred_fallthru
            _
          %359 = shalt.err (0)
          %s361 = sshll.u32 [#allocation2], 4
          %s362 = int_to_ptr.vmem [resolvable:$true] %s361
          %364 = dma.hbm_to_vmem [thread:$0]  %s0, 128, %s362, [#allocation3]
          %s365 = smul.u32 8, 1
          %s366 = sshll.u32 %s365, 4
          %367 = dma.done [#allocation3], %s366
        $region56: #{tpu_custom_call.1} parent=39 // pred_fallthru
          _
        %v368 = vld [vmem:[#allocation2] sm:$0xff]
        %v369 = vld [vmem:[%s280] sm:$0xff]
        %v370 = vpack.c.bf16 %v368, %v368
        %v371 = vld [vmem:[%s289] sm:$0xff]
        %v372 = vld [vmem:[%s289 + $0x8] sm:$0xf]
        %v373 = vld [vmem:[%s289 + $0xc] sm:$0xff]
        %v374 = vld [vmem:[%s289 + $0x14] sm:$0xf]
        %v375 = vld [vmem:[%s289 + $0x18] sm:$0xff]
        %v376 = vld [vmem:[%s289 + $0x20] sm:$0xf]
        %v377 = vld [vmem:[%s289 + $0x24] sm:$0xff]
        %v378 = vld [vmem:[%s289 + $0x2c] sm:$0xf]
        %v379 = vld [vmem:[%s289 + $0x30] sm:$0xff]
        %v380 = vld [vmem:[%s289 + $0x38] sm:$0xf]
        %v381 = vld [vmem:[%s289 + $0x3c] sm:$0xff]
        %v382 = vld [vmem:[%s289 + $0x44] sm:$0xf]
        %v383 = vld [vmem:[%s289 + $0x48] sm:$0xff]
        %v384 = vld [vmem:[%s289 + $0x50] sm:$0xf]
        %v385 = vld [vmem:[%s289 + $0x54] sm:$0xff]
        %v386 = vld [vmem:[%s289 + $0x5c] sm:$0xf]
        %v387 = vld [vmem:[%s289 + $0x60] sm:$0xff]
        %v388 = vld [vmem:[%s289 + $0x68] sm:$0xf]
        %v389 = vld [vmem:[%s289 + $0x6c] sm:$0xff]
        %v390 = vld [vmem:[%s289 + $0x74] sm:$0xf]
        %v391 = vld [vmem:[%s289 + $0x78] sm:$0xff]
        %v392 = vld [vmem:[%s289 + $0x80] sm:$0xf]
        %v393 = vld [vmem:[%s289 + $0x84] sm:$0xff]
        %v394 = vld [vmem:[%s289 + $0x8c] sm:$0xf]
        %v395 = vld [vmem:[%s289 + $0x90] sm:$0xff]
        %v396 = vld [vmem:[%s289 + $0x98] sm:$0xf]
        %v397 = vld [vmem:[%s289 + $0x9c] sm:$0xff]
        %v398 = vld [vmem:[%s289 + $0xa4] sm:$0xf]
        %v399 = vld [vmem:[%s289 + $0xa8] sm:$0xff]
        %v400 = vld [vmem:[%s289 + $0xb0] sm:$0xf]
        %v401 = vld [vmem:[%s289 + $0xb4] sm:$0xff]
        %v402 = vld [vmem:[%s289 + $0xbc] sm:$0xf]
        %v403 = vld [vmem:[%s345] sm:$0x7]
        %v405 = vlaneseq
        %v406 = vshrl.u32 %v405, 7
        %v407 = vsub.s32 0, %v406
        %v408 = vrot.slane %v403, %v407
        %v409 = vlaneseq
        %v410 = vshrl.u32 %v409, 7
        %v411 = vsub.s32 1, %v410
        %v412 = vrot.slane %v403, %v411
        %v413 = vlaneseq
        %v414 = vshrl.u32 %v413, 7
        %v415 = vsub.s32 2, %v414
        %v416 = vrot.slane %v403, %v415
        %v452 = vunpack.c.l.b16 %v371
        %v453 = vunpack.c.h.b16 %v371
        %v454 = vunpack.c.l.b16 %v372
        %v455 = vunpack.c.l.b16 %v373
        %v456 = vunpack.c.h.b16 %v373
        %v457 = vunpack.c.l.b16 %v374
        %v458 = vunpack.c.l.b16 %v375
        %v459 = vunpack.c.h.b16 %v375
        %v460 = vunpack.c.l.b16 %v376
        %v461 = vunpack.c.l.b16 %v377
        %v462 = vunpack.c.h.b16 %v377
        %v463 = vunpack.c.l.b16 %v378
        %v464 = vunpack.c.l.b16 %v379
        %v465 = vunpack.c.h.b16 %v379
        %v466 = vunpack.c.l.b16 %v380
        %v467 = vunpack.c.l.b16 %v381
        %v468 = vunpack.c.h.b16 %v381
        %v469 = vunpack.c.l.b16 %v382
        %v470 = vunpack.c.l.b16 %v383
        %v471 = vunpack.c.h.b16 %v383
        %v472 = vunpack.c.l.b16 %v384
        %v473 = vunpack.c.l.b16 %v385
        %v474 = vunpack.c.h.b16 %v385
        %v475 = vunpack.c.l.b16 %v386
        %v476 = vunpack.c.l.b16 %v387
        %v477 = vunpack.c.h.b16 %v387
        %v478 = vunpack.c.l.b16 %v388
        %v479 = vunpack.c.l.b16 %v389
        %v480 = vunpack.c.h.b16 %v389
        %v481 = vunpack.c.l.b16 %v390
        %v482 = vunpack.c.l.b16 %v391
        %v483 = vunpack.c.h.b16 %v391
        %v484 = vunpack.c.l.b16 %v392
        %v485 = vunpack.c.l.b16 %v393
        %v486 = vunpack.c.h.b16 %v393
        %v487 = vunpack.c.l.b16 %v394
        %v488 = vunpack.c.l.b16 %v395
        %v489 = vunpack.c.h.b16 %v395
        %v490 = vunpack.c.l.b16 %v396
        %v491 = vunpack.c.l.b16 %v397
        %v492 = vunpack.c.h.b16 %v397
        %v493 = vunpack.c.l.b16 %v398
        %v494 = vunpack.c.l.b16 %v399
        %v495 = vunpack.c.h.b16 %v399
        %v496 = vunpack.c.l.b16 %v400
        %v497 = vunpack.c.l.b16 %v401
        %v498 = vunpack.c.h.b16 %v401
        %v499 = vunpack.c.l.b16 %v402
        %v500 = vpack.c.b16 %v455, %v452
        %v501 = vpack.c.b16 %v456, %v453
        %v502 = vpack.c.b16 %v457, %v454
        %v503 = vpack.c.b16 %v461, %v458
        %v504 = vpack.c.b16 %v462, %v459
        %v505 = vpack.c.b16 %v463, %v460
        %v506 = vpack.c.b16 %v467, %v464
        %v507 = vpack.c.b16 %v468, %v465
        %v508 = vpack.c.b16 %v469, %v466
        %v509 = vpack.c.b16 %v473, %v470
        %v510 = vpack.c.b16 %v474, %v471
        %v511 = vpack.c.b16 %v475, %v472
        %v512 = vpack.c.b16 %v479, %v476
        %v513 = vpack.c.b16 %v480, %v477
        %v514 = vpack.c.b16 %v481, %v478
        %v515 = vpack.c.b16 %v485, %v482
        %v516 = vpack.c.b16 %v486, %v483
        %v517 = vpack.c.b16 %v487, %v484
        %v518 = vpack.c.b16 %v491, %v488
        %v519 = vpack.c.b16 %v492, %v489
        %v520 = vpack.c.b16 %v493, %v490
        %v521 = vpack.c.b16 %v497, %v494
        %v522 = vpack.c.b16 %v498, %v495
        %v523 = vpack.c.b16 %v499, %v496
        %548 = vmatprep.subr.bf16.mxu0 %v501
        %549 = vmatpush1.bf16.msra.mxu0 %v500
        %550 = vmatprep.subr.bf16.mxu0 %v504
        %551 = vmatpush1.bf16.msra.mxu0 %v503
        %552 = vmatprep.subr.bf16.mxu0 %v507
        %553 = vmatpush1.bf16.msra.mxu0 %v506
        %554 = vmatprep.subr.bf16.mxu0 %v510
        %555 = vmatpush1.bf16.msra.mxu0 %v509
        %556 = vmatprep.subr.bf16.mxu0 %v513
        %557 = vmatpush1.bf16.msra.mxu0 %v512
        %558 = vmatprep.subr.bf16.mxu0 %v516
        %559 = vmatpush1.bf16.msra.mxu0 %v515
        %560 = vmatprep.subr.bf16.mxu0 %v519
        %561 = vmatpush1.bf16.msra.mxu0 %v518
        %562 = vmatprep.subr.bf16.mxu0 %v522
        %563 = vmatpush1.bf16.msra.mxu0 %v521
        %564 = vmatprep.subr.bf16.mxu0 0
        %565 = vmatpush1.bf16.msra.mxu0 0
        %566 = vmatprep.subr.bf16.mxu0 0
        %567 = vmatpush1.bf16.msra.mxu0 0
        %568 = vmatprep.subr.bf16.mxu0 0
        %569 = vmatpush1.bf16.msra.mxu0 0
        %570 = vmatprep.subr.bf16.mxu0 0
        %571 = vmatpush1.bf16.msra.mxu0 0
        %572 = vmatprep.subr.bf16.mxu0 0
        %573 = vmatpush1.bf16.msra.mxu0 0
        %574 = vmatprep.subr.bf16.mxu0 0
        %575 = vmatpush1.bf16.msra.mxu0 0
        %576 = vmatprep.subr.bf16.mxu0 0
        %577 = vmatpush1.bf16.msra.mxu0 0
        %578 = vmatprep.subr.bf16.mxu0 0
        %579 = vmatpush1.bf16.msra.mxu0 0
        %580 = vmatprep.mubr.bf16.mxu0 0
        %581 = vmatmul.mubr.bf16.gmra.mrb[0].mxu0 %v370
        %v582 = vpop.f32.mrb[0].mxu0
        %v583 = vadd.f32 %v408, %v582
        %v584 = vpop.f32.mrb[0].mxu0
        %v585 = vadd.f32 %v412, %v584
        %v586 = vpop.f32.mrb[0].mxu0
        %v587 = vpop.f32.mrb[0].mxu0
        %588 = vdwg.mxu0
        %589 = vmatprep.subr.bf16.mxu0 0
        %590 = vmatpush1.bf16.msra.mxu0 %v502
        %591 = vmatprep.subr.bf16.mxu0 0
        %592 = vmatpush1.bf16.msra.mxu0 %v505
        %593 = vmatprep.subr.bf16.mxu0 0
        %594 = vmatpush1.bf16.msra.mxu0 %v508
        %595 = vmatprep.subr.bf16.mxu0 0
        %596 = vmatpush1.bf16.msra.mxu0 %v511
        %597 = vmatprep.subr.bf16.mxu0 0
        %598 = vmatpush1.bf16.msra.mxu0 %v514
        %599 = vmatprep.subr.bf16.mxu0 0
        %600 = vmatpush1.bf16.msra.mxu0 %v517
        %601 = vmatprep.subr.bf16.mxu0 0
        %602 = vmatpush1.bf16.msra.mxu0 %v520
        %603 = vmatprep.subr.bf16.mxu0 0
        %604 = vmatpush1.bf16.msra.mxu0 %v523
        %605 = vmatprep.subr.bf16.mxu0 0
        %606 = vmatpush1.bf16.msra.mxu0 0
        %607 = vmatprep.subr.bf16.mxu0 0
        %608 = vmatpush1.bf16.msra.mxu0 0
        %609 = vmatprep.subr.bf16.mxu0 0
        %610 = vmatpush1.bf16.msra.mxu0 0
        %611 = vmatprep.subr.bf16.mxu0 0
        %612 = vmatpush1.bf16.msra.mxu0 0
        %613 = vmatprep.subr.bf16.mxu0 0
        %614 = vmatpush1.bf16.msra.mxu0 0
        %615 = vmatprep.subr.bf16.mxu0 0
        %616 = vmatpush1.bf16.msra.mxu0 0
        %617 = vmatprep.subr.bf16.mxu0 0
        %618 = vmatpush1.bf16.msra.mxu0 0
        %619 = vmatprep.subr.bf16.mxu0 0
        %620 = vmatpush1.bf16.msra.mxu0 0
        %621 = vmatprep.mubr.bf16.mxu0 0
        %622 = vmatmul.mubr.bf16.gmra.mrb[0].mxu0 %v370
        %v623 = vpop.f32.mrb[0].mxu0
        %v624 = vadd.f32 %v416, %v623
        %v625 = vpop.f32.mrb[0].mxu0
        %v626 = vpop.f32.mrb[0].mxu0
        %v627 = vpop.f32.mrb[0].mxu0
        %628 = vdwg.mxu0
        %v629 = vpack.c.bf16 %v369, %v369
        %v630 = vld [vmem:[%s298] sm:$0xff]
        %v631 = vld [vmem:[%s298 + $0x8] sm:$0xf]
        %v632 = vld [vmem:[%s298 + $0xc] sm:$0xff]
        %v633 = vld [vmem:[%s298 + $0x14] sm:$0xf]
        %v634 = vld [vmem:[%s298 + $0x18] sm:$0xff]
        %v635 = vld [vmem:[%s298 + $0x20] sm:$0xf]
        %v636 = vld [vmem:[%s298 + $0x24] sm:$0xff]
        %v637 = vld [vmem:[%s298 + $0x2c] sm:$0xf]
        %v638 = vld [vmem:[%s298 + $0x30] sm:$0xff]
        %v639 = vld [vmem:[%s298 + $0x38] sm:$0xf]
        %v640 = vld [vmem:[%s298 + $0x3c] sm:$0xff]
        %v641 = vld [vmem:[%s298 + $0x44] sm:$0xf]
        %v642 = vld [vmem:[%s298 + $0x48] sm:$0xff]
        %v643 = vld [vmem:[%s298 + $0x50] sm:$0xf]
        %v644 = vld [vmem:[%s298 + $0x54] sm:$0xff]
        %v645 = vld [vmem:[%s298 + $0x5c] sm:$0xf]
        %v646 = vld [vmem:[%s298 + $0x60] sm:$0xff]
        %v647 = vld [vmem:[%s298 + $0x68] sm:$0xf]
        %v648 = vld [vmem:[%s298 + $0x6c] sm:$0xff]
        %v649 = vld [vmem:[%s298 + $0x74] sm:$0xf]
        %v650 = vld [vmem:[%s298 + $0x78] sm:$0xff]
        %v651 = vld [vmem:[%s298 + $0x80] sm:$0xf]
        %v652 = vld [vmem:[%s298 + $0x84] sm:$0xff]
        %v653 = vld [vmem:[%s298 + $0x8c] sm:$0xf]
        %v654 = vld [vmem:[%s298 + $0x90] sm:$0xff]
        %v655 = vld [vmem:[%s298 + $0x98] sm:$0xf]
        %v656 = vld [vmem:[%s298 + $0x9c] sm:$0xff]
        %v657 = vld [vmem:[%s298 + $0xa4] sm:$0xf]
        %v658 = vld [vmem:[%s298 + $0xa8] sm:$0xff]
        %v659 = vld [vmem:[%s298 + $0xb0] sm:$0xf]
        %v660 = vld [vmem:[%s298 + $0xb4] sm:$0xff]
        %v661 = vld [vmem:[%s298 + $0xbc] sm:$0xf]
        %v694 = vunpack.c.l.b16 %v630
        %v695 = vunpack.c.h.b16 %v630
        %v696 = vunpack.c.l.b16 %v631
        %v697 = vunpack.c.l.b16 %v632
        %v698 = vunpack.c.h.b16 %v632
        %v699 = vunpack.c.l.b16 %v633
        %v700 = vunpack.c.l.b16 %v634
        %v701 = vunpack.c.h.b16 %v634
        %v702 = vunpack.c.l.b16 %v635
        %v703 = vunpack.c.l.b16 %v636
        %v704 = vunpack.c.h.b16 %v636
        %v705 = vunpack.c.l.b16 %v637
        %v706 = vunpack.c.l.b16 %v638
        %v707 = vunpack.c.h.b16 %v638
        %v708 = vunpack.c.l.b16 %v639
        %v709 = vunpack.c.l.b16 %v640
        %v710 = vunpack.c.h.b16 %v640
        %v711 = vunpack.c.l.b16 %v641
        %v712 = vunpack.c.l.b16 %v642
        %v713 = vunpack.c.h.b16 %v642
        %v714 = vunpack.c.l.b16 %v643
        %v715 = vunpack.c.l.b16 %v644
        %v716 = vunpack.c.h.b16 %v644
        %v717 = vunpack.c.l.b16 %v645
        %v718 = vunpack.c.l.b16 %v646
        %v719 = vunpack.c.h.b16 %v646
        %v720 = vunpack.c.l.b16 %v647
        %v721 = vunpack.c.l.b16 %v648
        %v722 = vunpack.c.h.b16 %v648
        %v723 = vunpack.c.l.b16 %v649
        %v724 = vunpack.c.l.b16 %v650
        %v725 = vunpack.c.h.b16 %v650
        %v726 = vunpack.c.l.b16 %v651
        %v727 = vunpack.c.l.b16 %v652
        %v728 = vunpack.c.h.b16 %v652
        %v729 = vunpack.c.l.b16 %v653
        %v730 = vunpack.c.l.b16 %v654
        %v731 = vunpack.c.h.b16 %v654
        %v732 = vunpack.c.l.b16 %v655
        %v733 = vunpack.c.l.b16 %v656
        %v734 = vunpack.c.h.b16 %v656
        %v735 = vunpack.c.l.b16 %v657
        %v736 = vunpack.c.l.b16 %v658
        %v737 = vunpack.c.h.b16 %v658
        %v738 = vunpack.c.l.b16 %v659
        %v739 = vunpack.c.l.b16 %v660
        %v740 = vunpack.c.h.b16 %v660
        %v741 = vunpack.c.l.b16 %v661
        %v742 = vpack.c.b16 %v697, %v694
        %v743 = vpack.c.b16 %v698, %v695
        %v744 = vpack.c.b16 %v699, %v696
        %v745 = vpack.c.b16 %v703, %v700
        %v746 = vpack.c.b16 %v704, %v701
        %v747 = vpack.c.b16 %v705, %v702
        %v748 = vpack.c.b16 %v709, %v706
        %v749 = vpack.c.b16 %v710, %v707
        %v750 = vpack.c.b16 %v711, %v708
        %v751 = vpack.c.b16 %v715, %v712
        %v752 = vpack.c.b16 %v716, %v713
        %v753 = vpack.c.b16 %v717, %v714
        %v754 = vpack.c.b16 %v721, %v718
        %v755 = vpack.c.b16 %v722, %v719
        %v756 = vpack.c.b16 %v723, %v720
        %v757 = vpack.c.b16 %v727, %v724
        %v758 = vpack.c.b16 %v728, %v725
        %v759 = vpack.c.b16 %v729, %v726
        %v760 = vpack.c.b16 %v733, %v730
        %v761 = vpack.c.b16 %v734, %v731
        %v762 = vpack.c.b16 %v735, %v732
        %v763 = vpack.c.b16 %v739, %v736
        %v764 = vpack.c.b16 %v740, %v737
        %v765 = vpack.c.b16 %v741, %v738
        %790 = vmatprep.subr.bf16.mxu0 %v743
        %791 = vmatpush1.bf16.msra.mxu0 %v742
        %792 = vmatprep.subr.bf16.mxu0 %v746
        %793 = vmatpush1.bf16.msra.mxu0 %v745
        %794 = vmatprep.subr.bf16.mxu0 %v749
        %795 = vmatpush1.bf16.msra.mxu0 %v748
        %796 = vmatprep.subr.bf16.mxu0 %v752
        %797 = vmatpush1.bf16.msra.mxu0 %v751
        %798 = vmatprep.subr.bf16.mxu0 %v755
        %799 = vmatpush1.bf16.msra.mxu0 %v754
        %800 = vmatprep.subr.bf16.mxu0 %v758
        %801 = vmatpush1.bf16.msra.mxu0 %v757
        %802 = vmatprep.subr.bf16.mxu0 %v761
        %803 = vmatpush1.bf16.msra.mxu0 %v760
        %804 = vmatprep.subr.bf16.mxu0 %v764
        %805 = vmatpush1.bf16.msra.mxu0 %v763
        %806 = vmatprep.subr.bf16.mxu0 0
        %807 = vmatpush1.bf16.msra.mxu0 0
        %808 = vmatprep.subr.bf16.mxu0 0
        %809 = vmatpush1.bf16.msra.mxu0 0
        %810 = vmatprep.subr.bf16.mxu0 0
        %811 = vmatpush1.bf16.msra.mxu0 0
        %812 = vmatprep.subr.bf16.mxu0 0
        %813 = vmatpush1.bf16.msra.mxu0 0
        %814 = vmatprep.subr.bf16.mxu0 0
        %815 = vmatpush1.bf16.msra.mxu0 0
        %816 = vmatprep.subr.bf16.mxu0 0
        %817 = vmatpush1.bf16.msra.mxu0 0
        %818 = vmatprep.subr.bf16.mxu0 0
        %819 = vmatpush1.bf16.msra.mxu0 0
        %820 = vmatprep.subr.bf16.mxu0 0
        %821 = vmatpush1.bf16.msra.mxu0 0
        %822 = vmatprep.mubr.bf16.mxu0 0
        %823 = vmatmul.mubr.bf16.gmra.mrb[0].mxu0 %v629
        %v824 = vpop.f32.mrb[0].mxu0
        %v825 = vadd.f32 0.0, %v824
        %v826 = vpop.f32.mrb[0].mxu0
        %v827 = vadd.f32 0.0, %v826
        %v828 = vpop.f32.mrb[0].mxu0
        %v829 = vpop.f32.mrb[0].mxu0
        %830 = vdwg.mxu0
        %831 = vmatprep.subr.bf16.mxu0 0
        %832 = vmatpush1.bf16.msra.mxu0 %v744
        %833 = vmatprep.subr.bf16.mxu0 0
        %834 = vmatpush1.bf16.msra.mxu0 %v747
        %835 = vmatprep.subr.bf16.mxu0 0
        %836 = vmatpush1.bf16.msra.mxu0 %v750
        %837 = vmatprep.subr.bf16.mxu0 0
        %838 = vmatpush1.bf16.msra.mxu0 %v753
        %839 = vmatprep.subr.bf16.mxu0 0
        %840 = vmatpush1.bf16.msra.mxu0 %v756
        %841 = vmatprep.subr.bf16.mxu0 0
        %842 = vmatpush1.bf16.msra.mxu0 %v759
        %843 = vmatprep.subr.bf16.mxu0 0
        %844 = vmatpush1.bf16.msra.mxu0 %v762
        %845 = vmatprep.subr.bf16.mxu0 0
        %846 = vmatpush1.bf16.msra.mxu0 %v765
        %847 = vmatprep.subr.bf16.mxu0 0
        %848 = vmatpush1.bf16.msra.mxu0 0
        %849 = vmatprep.subr.bf16.mxu0 0
        %850 = vmatpush1.bf16.msra.mxu0 0
        %851 = vmatprep.subr.bf16.mxu0 0
        %852 = vmatpush1.bf16.msra.mxu0 0
        %853 = vmatprep.subr.bf16.mxu0 0
        %854 = vmatpush1.bf16.msra.mxu0 0
        %855 = vmatprep.subr.bf16.mxu0 0
        %856 = vmatpush1.bf16.msra.mxu0 0
        %857 = vmatprep.subr.bf16.mxu0 0
        %858 = vmatpush1.bf16.msra.mxu0 0
        %859 = vmatprep.subr.bf16.mxu0 0
        %860 = vmatpush1.bf16.msra.mxu0 0
        %861 = vmatprep.subr.bf16.mxu0 0
        %862 = vmatpush1.bf16.msra.mxu0 0
        %863 = vmatprep.mubr.bf16.mxu0 0
        %864 = vmatmul.mubr.bf16.gmra.mrb[0].mxu0 %v629
        %v865 = vpop.f32.mrb[0].mxu0
        %v866 = vadd.f32 0.0, %v865
        %v867 = vpop.f32.mrb[0].mxu0
        %v868 = vpop.f32.mrb[0].mxu0
        %v869 = vpop.f32.mrb[0].mxu0
        %870 = vdwg.mxu0
        %v871 = vadd.f32 %v583, %v825
        %v872 = vxor.u32 %v871, 2147483648
        %v873 = vmul.f32 %v872, 1.442695
        %v874 = vpow.pop %v873
        %v875 = vadd.f32 %v874, 1.0
        %v876 = vrcp.pop %v875
        %v877 = vmul.f32 1.0, %v876
        %v878 = vadd.f32 %v585, %v827
        %v879 = vxor.u32 %v878, 2147483648
        %v880 = vmul.f32 %v879, 1.442695
        %v881 = vpow.pop %v880
        %v882 = vadd.f32 %v881, 1.0
        %v883 = vrcp.pop %v882
        %v884 = vmul.f32 1.0, %v883
        %v885 = vld [vmem:[%s348] sm:$0x1]
        %v887 = vlaneseq
        %v888 = vshrl.u32 %v887, 7
        %v889 = vsub.s32 0, %v888
        %v890 = vrot.slane %v885, %v889
        %v892 = vadd.f32 %v866, %v890
        %v893 = vmul.f32 %v877, %v892
        %v894 = vadd.f32 %v624, %v893
        %v895 = vtanh.pop %v894
        %v896 = vsub.f32 %v369, %v895
        %v897 = vmul.f32 %v884, %v896
        %v898 = vadd.f32 %v895, %v897
        %899 = vst [vmem:[%s341] sm:$0xff] %v898
        %900 = vst [vmem:[#allocation2] sm:$0xff] %v898
        %s901 = sand.u32 %s164, 1
        %s902 = scalar_lea.sflag [#allocation6], %s901
        %s903 = sand.u32 %s164, 1
        %s904 = smul.addr %s903, 8
        %s905 = scalar_lea.vmem [#allocation10], %s904
        // Predicated region
        $region61: #{tpu_custom_call.1} parent=39 // pred_check
          %p906 = pneg %p174
        $region62: #{tpu_custom_call.1} parent=39 // pred_check_branch
          %908 = sbr.rel (%p906) target = $region64
        $region63: #{tpu_custom_call.1} parent=39 // pred_region
          %s910 = ssub.s32 128, 128
          %911 = vsyncadd %s902, %s910
          %s912 = smul.addr %s26, 128
          %s913 = scalar_lea.hbm %s6, %s912
          %s915 = sshll.u32 %s905, 4
          %s916 = int_to_ptr.vmem [resolvable:$true] %s915
          %918 = dma.vmem_to_hbm [thread:$0]  %s916, 128, %s913, %s902
        $region64: #{tpu_custom_call.1} parent=39 // pred_fallthru
          _
      $region40: #{tpu_custom_call.1} parent=5 // pred_fallthru
        _
      %p919 = scmp.le.s32.totalorder 2, %s21
      // Predicated region
      $region65: #{tpu_custom_call.1} parent=5 // pred_check
        %p920 = pneg %p919
      $region66: #{tpu_custom_call.1} parent=5 // pred_check_branch
        %922 = sbr.rel (%p920) target = $region68
      $region67: #{tpu_custom_call.1} parent=5 // pred_region
        %s923 = ssub.s32 %s21, 2
        // Predicated region
        $region69: #{tpu_custom_call.1} parent=67 // pred_check
          %p924 = pneg %p180
        $region70: #{tpu_custom_call.1} parent=67 // pred_check_branch
          %926 = sbr.rel (%p924) target = $region72
        $region71: #{tpu_custom_call.1} parent=67 // pred_region
          %s927 = sand.u32 %s165, 1
          %s928 = scalar_lea.sflag [#allocation6], %s927
          %s929 = sand.u32 %s165, 1
          %s930 = smul.addr %s929, 8
          %s931 = scalar_lea.vmem [#allocation10], %s930
          %932 = dma.done %s928, 128
        $region72: #{tpu_custom_call.1} parent=67 // pred_fallthru
          _
      $region68: #{tpu_custom_call.1} parent=5 // pred_fallthru
        _
    $region6: #{tpu_custom_call.1} parent=1 // loop_footer
      %s25 = sadd.s32 1, %s21
    $region7: #{tpu_custom_call.1} parent=1 // loop_footer_branch
      %20 = sbr.rel target = $region3
    $region8: #{tpu_custom_call.1} parent=1 // loop_exit
      _
    %933 = vsyncpa [#allocation5], 1
    %s934 = scalar_lea.sflag [#allocation5], 1
    %935 = vsyncpa %s934, 1
    %936 = vsyncpa [#allocation8], 1
    %s937 = scalar_lea.sflag [#allocation8], 1
    %938 = vsyncpa %s937, 1
    %939 = vsyncpa [#allocation6], 1
    %s940 = scalar_lea.sflag [#allocation6], 1
    %941 = vsyncpa %s940, 1
  %942 = vsyncmov [#allocation3]
  %s943 = vpop.sfrf %942
  %p944 = scmp.eq.s32.totalorder %s943, 0
  %p945 = pneg %p944
  %947 = shalt.err (%p945)

</llo_original>
